<compile_context>
chip_gen: v7x
topology: tpu7x:2x2x1
jax: 0.10.0
libtpu: 0.0.40
codegen_flags: <defaults>
</compile_context>

<pallas_src>
import jax
import jax.numpy as jnp
from jax.experimental import pallas as pl
from jax.experimental.pallas import tpu as pltpu

LANE = 128           # lane width: every layer width / K dim padded to this
MAX_BLOCK_B = 512    # max batch rows per grid step
MAX_BLOCK_K = 1024   # max layer-1 reduction elements per grid step


def _round_up(x, m):
    return ((x + m - 1) // m) * m


def legal_ai_defender_kernel(x_ref, w1_ref, ws_ref, bs_ref, o_ref, acc_ref):
    """Grid point (i, k): accumulate layer-1 partials over the K axis; on the
    last K step run bias+ReLU and the remaining 5 Linear+ReLU layers, store."""
    k = pl.program_id(1)

    @pl.when(k == 0)
    def _():
        acc_ref[...] = jnp.zeros_like(acc_ref)

    # Layer-1 partial product: bf16 operands, f32 accumulation on the MXU.
    acc_ref[...] += jnp.dot(x_ref[...], w1_ref[...],
                            preferred_element_type=jnp.float32)

    @pl.when(k == pl.num_programs(1) - 1)
    def _():
        # Layer 1 epilogue (f32 bias + ReLU).
        h = jnp.maximum(acc_ref[...] + bs_ref[0:1, :], 0.0)
        # Layers 2..6: [TB, PAD] @ [PAD, PAD], bf16 operands / f32 accumulate.
        n_mid = ws_ref.shape[0]
        for i in range(n_mid):                     # short static loop; unrolled
            h = jnp.dot(h.astype(jnp.bfloat16), ws_ref[i],
                        preferred_element_type=jnp.float32)
            h = jnp.maximum(h + bs_ref[i + 1:i + 2, :], 0.0)
        o_ref[...] = h.astype(o_ref.dtype)         # lane-dense [TB, 128] store


def _pad_to(a, shape):
    return jnp.pad(a, [(0, s - d) for d, s in zip(a.shape, shape)])


@jax.jit
def legal_ai_defender(x, params):
    """params: list of 6 (W [in,out], b [1,out]) tuples (f32).

    Returns [B, out_dim] f32 logits of relu(...relu(x @ W1 + b1)... @ W6 + b6),
    with matmuls in bf16 operands / f32 accumulation.
    """
    batch, in_dim = x.shape
    out_dim = params[-1][0].shape[1]
    n_layers = len(params)
    n_mid = n_layers - 1

    # Common padded width for every layer output (hidden and logits).
    widths = [w.shape[1] for w, _ in params]
    pad_w = _round_up(max(max(widths), 1), LANE)

    # Adaptive batch tile: no 128-row padding for tiny batches; big tiles for
    # large batches. block_b is either the full (padded) batch or a multiple
    # of 512, so bf16/f32 sublane constraints are always satisfied.
    block_b = min(MAX_BLOCK_B, _round_up(batch, 8))
    b_pad = _round_up(batch, block_b)

    # Layer-1 K tiling: pad in_dim to a multiple of 128, then to a multiple of
    # the K tile so the reduction grid axis divides evenly.
    pad_k0 = _round_up(in_dim, LANE)
    block_k = min(MAX_BLOCK_K, pad_k0)
    pad_k = _round_up(pad_k0, block_k)

    # Pack / pad parameters (plain JAX, outside the kernel). Matmul operands
    # in bf16; biases stay f32 for the epilogue adds.
    w1p = _pad_to(params[0][0], (pad_k, pad_w)).astype(jnp.bfloat16)     # [K, PAD]
    wstack = jnp.stack(
        [_pad_to(w, (pad_w, pad_w)) for w, _ in params[1:]]
    ).astype(jnp.bfloat16)                                               # [5, PAD, PAD]
    bstack = jnp.stack(
        [_pad_to(b.reshape(-1), (pad_w,)) for _, b in params]
    ).astype(jnp.float32)                                                # [6, PAD]

    # Pad batch rows and K columns of x with zeros (exact under matmul).
    xp = _pad_to(x.astype(jnp.float32), (b_pad, pad_k)).astype(jnp.bfloat16)

    grid = (b_pad // block_b, pad_k // block_k)

    flops = 2 * b_pad * (pad_k * pad_w + n_mid * pad_w * pad_w)
    bytes_accessed = (2 * xp.size + 2 * w1p.size + 2 * wstack.size
                      + 4 * bstack.size + 4 * b_pad * pad_w)

    out = pl.pallas_call(
        legal_ai_defender_kernel,
        out_shape=jax.ShapeDtypeStruct((b_pad, pad_w), jnp.float32),
        grid=grid,
        in_specs=[
            pl.BlockSpec((block_b, block_k), lambda i, k: (i, k)),        # x tile
            pl.BlockSpec((block_k, pad_w), lambda i, k: (k, 0)),          # W1 K-slab
            pl.BlockSpec((n_mid, pad_w, pad_w), lambda i, k: (0, 0, 0)),  # W2..W6 packed
            pl.BlockSpec((n_layers, pad_w), lambda i, k: (0, 0)),         # biases packed
        ],
        out_specs=pl.BlockSpec((block_b, pad_w), lambda i, k: (i, 0)),
        scratch_shapes=[pltpu.VMEM((block_b, pad_w), jnp.float32)],       # layer-1 acc
        compiler_params=pltpu.CompilerParams(
            dimension_semantics=("parallel", "arbitrary"),
            vmem_limit_bytes=32 * 1024 * 1024),
        cost_estimate=pl.CostEstimate(
            flops=flops, transcendentals=0, bytes_accessed=bytes_accessed),
    )(xp, w1p, wstack, bstack)

    return out[:batch, :out_dim]


def init_linear(key, fan_in, fan_out):
    # PyTorch nn.Linear default init: U(-1/sqrt(fan_in), 1/sqrt(fan_in)).
    kw, kb = jax.random.split(key)
    bound = 1.0 / jnp.sqrt(jnp.float32(fan_in))
    w = jax.random.uniform(kw, (fan_in, fan_out), jnp.float32, -bound, bound)
    b = jax.random.uniform(kb, (1, fan_out), jnp.float32, -bound, bound)
    return w, b


def reference_forward(x, params):
    """Matches the kernel's math: bf16 matmul operands, f32 accumulation."""
    h = x.astype(jnp.float32)
    for w, b in params:
        h = jnp.dot(h.astype(jnp.bfloat16), w.astype(jnp.bfloat16),
                    preferred_element_type=jnp.float32) + b
        h = jnp.maximum(h, 0.0)
    return h


if __name__ == "__main__":
    # Small shapes consistent with the module (bag-of-words -> hidden -> 2).
    BATCH = 8
    INPUT_DIM = 64    # stands in for the CountVectorizer vocabulary size
    HIDDEN = 32       # stands in for hidden_dim=100
    OUTPUT_DIM = 2

    key = jax.random.PRNGKey(0)
    keys = jax.random.split(key, 7)

    layer_dims = [
        (INPUT_DIM, HIDDEN),   # Network1.fc1
        (HIDDEN, HIDDEN),      # Network1.fc2
        (HIDDEN, HIDDEN),      # Network2.fc1
        (HIDDEN, HIDDEN),      # Network2.fc2
        (HIDDEN, HIDDEN),      # Network3.fc1
        (HIDDEN, OUTPUT_DIM),  # Network3.fc2
    ]
    params = [init_linear(k, fi, fo) for k, (fi, fo) in zip(keys[:6], layer_dims)]

    # Non-negative integer counts (like CountVectorizer output), cast to f32
    # (no integer MXU path on TPU).
    x = jax.random.randint(keys[6], (BATCH, INPUT_DIM), 0, 5).astype(jnp.float32)

    out = legal_ai_defender(x, params)
    out = jax.block_until_ready(out)

    ref = reference_forward(x, params)
    assert out.shape == (BATCH, OUTPUT_DIM), out.shape
    assert jnp.allclose(out, ref, atol=1e-3, rtol=1e-3), "mismatch vs reference"

    print("KERNEL_OK")
</pallas_src>

<mosaic_0001>
module attributes {stable_mosaic.version = 11 : i64} {
  func.func @legal_ai_defender_kernel(%arg0: i32, %arg1: i32, %arg2: memref<8x128xbf16, #tpu.memory_space<vmem>>, %arg3: memref<128x128xbf16, #tpu.memory_space<vmem>>, %arg4: memref<5x128x128xbf16, #tpu.memory_space<vmem>>, %arg5: memref<6x128xf32, #tpu.memory_space<vmem>>, %arg6: memref<8x128xf32, #tpu.memory_space<vmem>>, %arg7: memref<8x128xf32, #tpu.memory_space<vmem>>) attributes {dimension_semantics = [#tpu.dimension_semantics<parallel>, #tpu.dimension_semantics<arbitrary>], iteration_bounds = array<i64: 1, 1>, scalar_prefetch = 0 : i64, scratch_operands = 1 : i64, tpu.core_type = #tpu.core_type<tc>, window_params = [{transform_indices = @transform_0, window_bounds = array<i64: 8, 128>}, {transform_indices = @transform_1, window_bounds = array<i64: 128, 128>}, {pipeline_mode = #tpu.pipeline_mode<synchronous>, transform_indices = @transform_2, window_bounds = array<i64: 5, 128, 128>}, {pipeline_mode = #tpu.pipeline_mode<synchronous>, transform_indices = @transform_3, window_bounds = array<i64: 6, 128>}, {transform_indices = @transform_4, window_bounds = array<i64: 8, 128>}]} {
    %c0_i32 = arith.constant 0 : i32
    %0 = arith.cmpi eq, %arg1, %c0_i32 : i32
    %1 = arith.extui %0 : i1 to i32
    %c0_i32_0 = arith.constant 0 : i32
    %2 = arith.cmpi ne, %1, %c0_i32_0 : i32
    scf.if %2 {
      %cst_10 = arith.constant 0.000000e+00 : f32
      %12 = vector.broadcast %cst_10 : f32 to vector<8x128xf32>
      %c0_11 = arith.constant 0 : index
      %c0_12 = arith.constant 0 : index
      %13 = vector.load %arg7[%c0_11, %c0_12] : memref<8x128xf32, #tpu.memory_space<vmem>>, vector<8x128xf32>
      tpu.vector_store %arg7[%c0_11, %c0_12], %12 {strides = array<i32>} : memref<8x128xf32, #tpu.memory_space<vmem>>, vector<8x128xf32>,
    } else {
    }
    %c0 = arith.constant 0 : index
    %c0_1 = arith.constant 0 : index
    %3 = vector.load %arg7[%c0, %c0_1] : memref<8x128xf32, #tpu.memory_space<vmem>>, vector<8x128xf32>
    %c0_2 = arith.constant 0 : index
    %c0_3 = arith.constant 0 : index
    %4 = vector.load %arg2[%c0_2, %c0_3] : memref<8x128xbf16, #tpu.memory_space<vmem>>, vector<8x128xbf16>
    %c0_4 = arith.constant 0 : index
    %c0_5 = arith.constant 0 : index
    %5 = vector.load %arg3[%c0_4, %c0_5] : memref<128x128xbf16, #tpu.memory_space<vmem>>, vector<128x128xbf16>
    %cst = arith.constant dense<0.000000e+00> : vector<8x128xf32>
    %6 = tpu.matmul %4, %5, %cst {dimension_numbers = #tpu.dot_dimension_numbers<[1], [0], [0], [1], [0, 0, 1, 1], [], []>} : vector<8x128xbf16>, vector<128x128xbf16>, vector<8x128xf32> -> vector<8x128xf32>
    %7 = arith.addf %3, %6 : vector<8x128xf32>
    %c0_6 = arith.constant 0 : index
    %c0_7 = arith.constant 0 : index
    %8 = vector.load %arg7[%c0_6, %c0_7] : memref<8x128xf32, #tpu.memory_space<vmem>>, vector<8x128xf32>
    tpu.vector_store %arg7[%c0_6, %c0_7], %7 {strides = array<i32>} : memref<8x128xf32, #tpu.memory_space<vmem>>, vector<8x128xf32>,
    %c0_i32_8 = arith.constant 0 : i32
    %9 = arith.cmpi eq, %arg1, %c0_i32_8 : i32
    %10 = arith.extui %9 : i1 to i32
    %c0_i32_9 = arith.constant 0 : i32
    %11 = arith.cmpi ne, %10, %c0_i32_9 : i32
    scf.if %11 {
      %c0_10 = arith.constant 0 : index
      %c0_11 = arith.constant 0 : index
      %12 = vector.load %arg7[%c0_10, %c0_11] : memref<8x128xf32, #tpu.memory_space<vmem>>, vector<8x128xf32>
      %c0_12 = arith.constant 0 : index
      %c0_13 = arith.constant 0 : index
      %13 = vector.load %arg5[%c0_12, %c0_13] : memref<6x128xf32, #tpu.memory_space<vmem>>, vector<1x128xf32>
      %14 = vector.broadcast %13 : vector<1x128xf32> to vector<8x128xf32>
      %15 = arith.addf %12, %14 : vector<8x128xf32>
      %cst_14 = arith.constant 0.000000e+00 : f32
      %16 = vector.broadcast %cst_14 : f32 to vector<8x128xf32>
      %17 = arith.maximumf %15, %16 : vector<8x128xf32>
      %18 = arith.truncf %17 : vector<8x128xf32> to vector<8x128xbf16>
      %c0_15 = arith.constant 0 : index
      %c0_16 = arith.constant 0 : index
      %c0_17 = arith.constant 0 : index
      %19 = vector.load %arg4[%c0_15, %c0_16, %c0_17] : memref<5x128x128xbf16, #tpu.memory_space<vmem>>, vector<1x128x128xbf16>
      %20 = vector.shape_cast %19 : vector<1x128x128xbf16> to vector<128x128xbf16>
      %cst_18 = arith.constant dense<0.000000e+00> : vector<8x128xf32>
      %21 = tpu.matmul %18, %20, %cst_18 {dimension_numbers = #tpu.dot_dimension_numbers<[1], [0], [0], [1], [0, 0, 1, 1], [], []>} : vector<8x128xbf16>, vector<128x128xbf16>, vector<8x128xf32> -> vector<8x128xf32>
      %c1 = arith.constant 1 : index
      %c0_19 = arith.constant 0 : index
      %22 = vector.load %arg5[%c1, %c0_19] : memref<6x128xf32, #tpu.memory_space<vmem>>, vector<1x128xf32>
      %23 = vector.broadcast %22 : vector<1x128xf32> to vector<8x128xf32>
      %24 = arith.addf %21, %23 : vector<8x128xf32>
      %cst_20 = arith.constant 0.000000e+00 : f32
      %25 = vector.broadcast %cst_20 : f32 to vector<8x128xf32>
      %26 = arith.maximumf %24, %25 : vector<8x128xf32>
      %27 = arith.truncf %26 : vector<8x128xf32> to vector<8x128xbf16>
      %c1_21 = arith.constant 1 : index
      %c0_22 = arith.constant 0 : index
      %c0_23 = arith.constant 0 : index
      %28 = vector.load %arg4[%c1_21, %c0_22, %c0_23] : memref<5x128x128xbf16, #tpu.memory_space<vmem>>, vector<1x128x128xbf16>
      %29 = vector.shape_cast %28 : vector<1x128x128xbf16> to vector<128x128xbf16>
      %cst_24 = arith.constant dense<0.000000e+00> : vector<8x128xf32>
      %30 = tpu.matmul %27, %29, %cst_24 {dimension_numbers = #tpu.dot_dimension_numbers<[1], [0], [0], [1], [0, 0, 1, 1], [], []>} : vector<8x128xbf16>, vector<128x128xbf16>, vector<8x128xf32> -> vector<8x128xf32>
      %c2 = arith.constant 2 : index
      %c0_25 = arith.constant 0 : index
      %31 = vector.load %arg5[%c2, %c0_25] : memref<6x128xf32, #tpu.memory_space<vmem>>, vector<1x128xf32>
      %32 = vector.broadcast %31 : vector<1x128xf32> to vector<8x128xf32>
      %33 = arith.addf %30, %32 : vector<8x128xf32>
      %cst_26 = arith.constant 0.000000e+00 : f32
      %34 = vector.broadcast %cst_26 : f32 to vector<8x128xf32>
      %35 = arith.maximumf %33, %34 : vector<8x128xf32>
      %36 = arith.truncf %35 : vector<8x128xf32> to vector<8x128xbf16>
      %c2_27 = arith.constant 2 : index
      %c0_28 = arith.constant 0 : index
      %c0_29 = arith.constant 0 : index
      %37 = vector.load %arg4[%c2_27, %c0_28, %c0_29] : memref<5x128x128xbf16, #tpu.memory_space<vmem>>, vector<1x128x128xbf16>
      %38 = vector.shape_cast %37 : vector<1x128x128xbf16> to vector<128x128xbf16>
      %cst_30 = arith.constant dense<0.000000e+00> : vector<8x128xf32>
      %39 = tpu.matmul %36, %38, %cst_30 {dimension_numbers = #tpu.dot_dimension_numbers<[1], [0], [0], [1], [0, 0, 1, 1], [], []>} : vector<8x128xbf16>, vector<128x128xbf16>, vector<8x128xf32> -> vector<8x128xf32>
      %c3 = arith.constant 3 : index
      %c0_31 = arith.constant 0 : index
      %40 = vector.load %arg5[%c3, %c0_31] : memref<6x128xf32, #tpu.memory_space<vmem>>, vector<1x128xf32>
      %41 = vector.broadcast %40 : vector<1x128xf32> to vector<8x128xf32>
      %42 = arith.addf %39, %41 : vector<8x128xf32>
      %cst_32 = arith.constant 0.000000e+00 : f32
      %43 = vector.broadcast %cst_32 : f32 to vector<8x128xf32>
      %44 = arith.maximumf %42, %43 : vector<8x128xf32>
      %45 = arith.truncf %44 : vector<8x128xf32> to vector<8x128xbf16>
      %c3_33 = arith.constant 3 : index
      %c0_34 = arith.constant 0 : index
      %c0_35 = arith.constant 0 : index
      %46 = vector.load %arg4[%c3_33, %c0_34, %c0_35] : memref<5x128x128xbf16, #tpu.memory_space<vmem>>, vector<1x128x128xbf16>
      %47 = vector.shape_cast %46 : vector<1x128x128xbf16> to vector<128x128xbf16>
      %cst_36 = arith.constant dense<0.000000e+00> : vector<8x128xf32>
      %48 = tpu.matmul %45, %47, %cst_36 {dimension_numbers = #tpu.dot_dimension_numbers<[1], [0], [0], [1], [0, 0, 1, 1], [], []>} : vector<8x128xbf16>, vector<128x128xbf16>, vector<8x128xf32> -> vector<8x128xf32>
      %c4 = arith.constant 4 : index
      %c0_37 = arith.constant 0 : index
      %49 = vector.load %arg5[%c4, %c0_37] : memref<6x128xf32, #tpu.memory_space<vmem>>, vector<1x128xf32>
      %50 = vector.broadcast %49 : vector<1x128xf32> to vector<8x128xf32>
      %51 = arith.addf %48, %50 : vector<8x128xf32>
      %cst_38 = arith.constant 0.000000e+00 : f32
      %52 = vector.broadcast %cst_38 : f32 to vector<8x128xf32>
      %53 = arith.maximumf %51, %52 : vector<8x128xf32>
      %54 = arith.truncf %53 : vector<8x128xf32> to vector<8x128xbf16>
      %c4_39 = arith.constant 4 : index
      %c0_40 = arith.constant 0 : index
      %c0_41 = arith.constant 0 : index
      %55 = vector.load %arg4[%c4_39, %c0_40, %c0_41] : memref<5x128x128xbf16, #tpu.memory_space<vmem>>, vector<1x128x128xbf16>
      %56 = vector.shape_cast %55 : vector<1x128x128xbf16> to vector<128x128xbf16>
      %cst_42 = arith.constant dense<0.000000e+00> : vector<8x128xf32>
      %57 = tpu.matmul %54, %56, %cst_42 {dimension_numbers = #tpu.dot_dimension_numbers<[1], [0], [0], [1], [0, 0, 1, 1], [], []>} : vector<8x128xbf16>, vector<128x128xbf16>, vector<8x128xf32> -> vector<8x128xf32>
      %c5 = arith.constant 5 : index
      %c0_43 = arith.constant 0 : index
      %58 = vector.load %arg5[%c5, %c0_43] : memref<6x128xf32, #tpu.memory_space<vmem>>, vector<1x128xf32>
      %59 = vector.broadcast %58 : vector<1x128xf32> to vector<8x128xf32>
      %60 = arith.addf %57, %59 : vector<8x128xf32>
      %cst_44 = arith.constant 0.000000e+00 : f32
      %61 = vector.broadcast %cst_44 : f32 to vector<8x128xf32>
      %62 = arith.maximumf %60, %61 : vector<8x128xf32>
      %c0_45 = arith.constant 0 : index
      %c0_46 = arith.constant 0 : index
      %63 = vector.load %arg6[%c0_45, %c0_46] : memref<8x128xf32, #tpu.memory_space<vmem>>, vector<8x128xf32>
      tpu.vector_store %arg6[%c0_45, %c0_46], %62 {strides = array<i32>} : memref<8x128xf32, #tpu.memory_space<vmem>>, vector<8x128xf32>,
    } else {
    }
    return
  }
  func.func @transform_0(%arg0: i32, %arg1: i32) -> (i32, i32) {
    %c0_i32 = arith.constant 0 : i32
    return %arg0, %arg1 : i32, i32
  }
  func.func @transform_1(%arg0: i32, %arg1: i32) -> (i32, i32) {
    %c0_i32 = arith.constant 0 : i32
    %c0_i32_0 = arith.constant 0 : i32
    return %arg1, %c0_i32 : i32, i32
  }
  func.func @transform_2(%arg0: i32, %arg1: i32) -> (i32, i32, i32) {
    %c0_i32 = arith.constant 0 : i32
    %c0_i32_0 = arith.constant 0 : i32
    %c0_i32_1 = arith.constant 0 : i32
    %c0_i32_2 = arith.constant 0 : i32
    return %c0_i32, %c0_i32_0, %c0_i32_1 : i32, i32, i32
  }
  func.func @transform_3(%arg0: i32, %arg1: i32) -> (i32, i32) {
    %c0_i32 = arith.constant 0 : i32
    %c0_i32_0 = arith.constant 0 : i32
    %c0_i32_1 = arith.constant 0 : i32
    return %c0_i32, %c0_i32_0 : i32, i32
  }
  func.func @transform_4(%arg0: i32, %arg1: i32) -> (i32, i32) {
    %c0_i32 = arith.constant 0 : i32
    %c0_i32_0 = arith.constant 0 : i32
    return %arg0, %c0_i32 : i32, i32
  }
}

</mosaic_0001>

<llo_original>
// kernel: legal_ai_defender.1
$region0: #{legal_ai_defender.1}
  #allocation0 [shape = 'u32[]', space=smem, size = 0x4, offset = 0x4, fixed_abs, tag = 'smem constant byte address 0x4 - core index']
  #allocation1 [shape = 'u32[144,128]{1,0:T(1,128)}', space=vmem, size = 0x12000, scoped, tag = 'internal scratch']
  #allocation2 [shape = 'f32[8,128]{1,0:T(8,128)}', space=vmem, size = 0x1000, scoped, tag = 'scratch operand']
  %s0 = inlined_call_operand.vmem [shape: bf16[8,128], index: 0, kind: input, shape index: {}]
  %s1 = inlined_call_operand.vmem [shape: bf16[128,128], index: 1, kind: input, shape index: {}]
  %s2 = inlined_call_operand.vmem [shape: bf16[5,128,128], index: 2, kind: input, shape index: {}]
  %s3 = inlined_call_operand.vmem [shape: f32[6,128], index: 3, kind: input, shape index: {}]
  %s4 = inlined_call_operand.vmem [shape: f32[8,128], index: 4, kind: output, shape index: {}]
  %s5 = sld [smem:[#allocation0]]
  $region34: #{legal_ai_defender.1} parent=0
    _
  %s7 = ssub.s32 1, %s5
  %s8 = scalar_select 0, %s7, %s5
  // Predicated region
  $region2: #{legal_ai_defender.1} parent=0 // pred_check
    _
  $region3: #{legal_ai_defender.1} parent=0 // pred_check_branch
    %10 = sbr.rel (0) target = $region5
  $region4: #{legal_ai_defender.1} parent=0 // pred_region
    _
  $region5: #{legal_ai_defender.1} parent=0 // pred_fallthru
    _
  // Predicated region
  $region6: #{legal_ai_defender.1} parent=0 // pred_check
    _
  $region7: #{legal_ai_defender.1} parent=0 // pred_check_branch
    %12 = sbr.rel (0) target = $region9
  $region8: #{legal_ai_defender.1} parent=0 // pred_region
    _
  $region9: #{legal_ai_defender.1} parent=0 // pred_fallthru
    _
  // Predicated region
  $region10: #{legal_ai_defender.1} parent=0 // pred_check
    _
  $region11: #{legal_ai_defender.1} parent=0 // pred_check_branch
    %14 = sbr.rel (0) target = $region13
  $region12: #{legal_ai_defender.1} parent=0 // pred_region
    _
  $region13: #{legal_ai_defender.1} parent=0 // pred_fallthru
    _
  // Predicated region
  $region14: #{legal_ai_defender.1} parent=0 // pred_check
    _
  $region15: #{legal_ai_defender.1} parent=0 // pred_check_branch
    %16 = sbr.rel (0) target = $region17
  $region16: #{legal_ai_defender.1} parent=0 // pred_region
    _
  $region17: #{legal_ai_defender.1} parent=0 // pred_fallthru
    _
  %p18 = scmp.eq.s32.totalorder 0, 0
  // Predicated region
  $region18: #{legal_ai_defender.1} parent=0 // pred_check
    %p19 = pneg %p18
  $region19: #{legal_ai_defender.1} parent=0 // pred_check_branch
    %21 = sbr.rel (%p19) target = $region21
  $region20: #{legal_ai_defender.1} parent=0 // pred_region
    %22 = vst [vmem:[#allocation2] sm:$0xff] 0.0
  $region21: #{legal_ai_defender.1} parent=0 // pred_fallthru
    _
  %v23 = vld [vmem:[#allocation2] sm:$0xff]
  %v24 = vld [vmem:[%s0] sm:$0xf]
  %v25 = vld [vmem:[%s1] sm:$0xf]
  %v26 = vld [vmem:[%s1 + $0x4] sm:$0xf]
  %v27 = vld [vmem:[%s1 + $0x8] sm:$0xf]
  %v28 = vld [vmem:[%s1 + $0xc] sm:$0xf]
  %v29 = vld [vmem:[%s1 + $0x10] sm:$0xf]
  %v30 = vld [vmem:[%s1 + $0x14] sm:$0xf]
  %v31 = vld [vmem:[%s1 + $0x18] sm:$0xf]
  %v32 = vld [vmem:[%s1 + $0x1c] sm:$0xf]
  %v33 = vld [vmem:[%s1 + $0x20] sm:$0xf]
  %v34 = vld [vmem:[%s1 + $0x24] sm:$0xf]
  %v35 = vld [vmem:[%s1 + $0x28] sm:$0xf]
  %v36 = vld [vmem:[%s1 + $0x2c] sm:$0xf]
  %v37 = vld [vmem:[%s1 + $0x30] sm:$0xf]
  %v38 = vld [vmem:[%s1 + $0x34] sm:$0xf]
  %v39 = vld [vmem:[%s1 + $0x38] sm:$0xf]
  %v40 = vld [vmem:[%s1 + $0x3c] sm:$0xf]
  %v57 = vunpack.c.l.b16 %v25
  %v58 = vunpack.c.l.b16 %v26
  %v59 = vunpack.c.l.b16 %v27
  %v60 = vunpack.c.l.b16 %v28
  %v61 = vunpack.c.l.b16 %v29
  %v62 = vunpack.c.l.b16 %v30
  %v63 = vunpack.c.l.b16 %v31
  %v64 = vunpack.c.l.b16 %v32
  %v65 = vunpack.c.l.b16 %v33
  %v66 = vunpack.c.l.b16 %v34
  %v67 = vunpack.c.l.b16 %v35
  %v68 = vunpack.c.l.b16 %v36
  %v69 = vunpack.c.l.b16 %v37
  %v70 = vunpack.c.l.b16 %v38
  %v71 = vunpack.c.l.b16 %v39
  %v72 = vunpack.c.l.b16 %v40
  %v73 = vpack.c.b16 %v58, %v57
  %v74 = vpack.c.b16 %v60, %v59
  %v75 = vpack.c.b16 %v62, %v61
  %v76 = vpack.c.b16 %v64, %v63
  %v77 = vpack.c.b16 %v66, %v65
  %v78 = vpack.c.b16 %v68, %v67
  %v79 = vpack.c.b16 %v70, %v69
  %v80 = vpack.c.b16 %v72, %v71
  %89 = vmatprep.subr.bf16.mxu0 0
  %90 = vmatpush1.bf16.msra.mxu0 %v73
  %91 = vmatprep.subr.bf16.mxu0 0
  %92 = vmatpush1.bf16.msra.mxu0 %v74
  %93 = vmatprep.subr.bf16.mxu0 0
  %94 = vmatpush1.bf16.msra.mxu0 %v75
  %95 = vmatprep.subr.bf16.mxu0 0
  %96 = vmatpush1.bf16.msra.mxu0 %v76
  %97 = vmatprep.subr.bf16.mxu0 0
  %98 = vmatpush1.bf16.msra.mxu0 %v77
  %99 = vmatprep.subr.bf16.mxu0 0
  %100 = vmatpush1.bf16.msra.mxu0 %v78
  %101 = vmatprep.subr.bf16.mxu0 0
  %102 = vmatpush1.bf16.msra.mxu0 %v79
  %103 = vmatprep.subr.bf16.mxu0 0
  %104 = vmatpush1.bf16.msra.mxu0 %v80
  %105 = vmatprep.subr.bf16.mxu0 0
  %106 = vmatpush1.bf16.msra.mxu0 0
  %107 = vmatprep.subr.bf16.mxu0 0
  %108 = vmatpush1.bf16.msra.mxu0 0
  %109 = vmatprep.subr.bf16.mxu0 0
  %110 = vmatpush1.bf16.msra.mxu0 0
  %111 = vmatprep.subr.bf16.mxu0 0
  %112 = vmatpush1.bf16.msra.mxu0 0
  %113 = vmatprep.subr.bf16.mxu0 0
  %114 = vmatpush1.bf16.msra.mxu0 0
  %115 = vmatprep.subr.bf16.mxu0 0
  %116 = vmatpush1.bf16.msra.mxu0 0
  %117 = vmatprep.subr.bf16.mxu0 0
  %118 = vmatpush1.bf16.msra.mxu0 0
  %119 = vmatprep.subr.bf16.mxu0 0
  %120 = vmatpush1.bf16.msra.mxu0 0
  %121 = vmatprep.mubr.bf16.mxu0 0
  %122 = vmatmul.mubr.bf16.gmra.mrb[0].mxu0 %v24
  %v123 = vpop.f32.mrb[0].mxu0
  %v124 = vadd.f32 0.0, %v123
  %v125 = vpop.f32.mrb[0].mxu0
  %v126 = vpop.f32.mrb[0].mxu0
  %v127 = vpop.f32.mrb[0].mxu0
  %128 = vdwg.mxu0
  %v129 = vadd.f32 %v23, %v124
  %130 = vst [vmem:[#allocation2] sm:$0xff] %v129
  // Predicated region
  $region22: #{legal_ai_defender.1} parent=0 // pred_check
    %p131 = pneg %p18
  $region23: #{legal_ai_defender.1} parent=0 // pred_check_branch
    %133 = sbr.rel (%p131) target = $region25
  $region24: #{legal_ai_defender.1} parent=0 // pred_region
    %v134 = vld [vmem:[#allocation2] sm:$0xff]
    %v135 = vld [vmem:[%s3] sm:$0x1]
    %v136 = vlaneseq
    %v137 = vshrl.u32 %v136, 7
    %v138 = vsub.s32 0, %v137
    %v139 = vrot.slane %v135, %v138
    %v140 = vadd.f32 %v134, %v139
    %v141 = vmax.f32 %v140, 0.0
    %v142 = vpack.c.bf16 %v141, %v141
    %v143 = vld [vmem:[%s2] sm:$0xf]
    %v144 = vld [vmem:[%s2 + $0x4] sm:$0xf]
    %v145 = vld [vmem:[%s2 + $0x8] sm:$0xf]
    %v146 = vld [vmem:[%s2 + $0xc] sm:$0xf]
    %v147 = vld [vmem:[%s2 + $0x10] sm:$0xf]
    %v148 = vld [vmem:[%s2 + $0x14] sm:$0xf]
    %v149 = vld [vmem:[%s2 + $0x18] sm:$0xf]
    %v150 = vld [vmem:[%s2 + $0x1c] sm:$0xf]
    %v151 = vld [vmem:[%s2 + $0x20] sm:$0xf]
    %v152 = vld [vmem:[%s2 + $0x24] sm:$0xf]
    %v153 = vld [vmem:[%s2 + $0x28] sm:$0xf]
    %v154 = vld [vmem:[%s2 + $0x2c] sm:$0xf]
    %v155 = vld [vmem:[%s2 + $0x30] sm:$0xf]
    %v156 = vld [vmem:[%s2 + $0x34] sm:$0xf]
    %v157 = vld [vmem:[%s2 + $0x38] sm:$0xf]
    %v158 = vld [vmem:[%s2 + $0x3c] sm:$0xf]
    %v159 = vld [vmem:[%s3 + $0x1] sm:$0x1]
    %v160 = vlaneseq
    %v161 = vshrl.u32 %v160, 7
    %v162 = vsub.s32 0, %v161
    %v163 = vrot.slane %v159, %v162
    %v180 = vunpack.c.l.b16 %v143
    %v181 = vunpack.c.l.b16 %v144
    %v182 = vunpack.c.l.b16 %v145
    %v183 = vunpack.c.l.b16 %v146
    %v184 = vunpack.c.l.b16 %v147
    %v185 = vunpack.c.l.b16 %v148
    %v186 = vunpack.c.l.b16 %v149
    %v187 = vunpack.c.l.b16 %v150
    %v188 = vunpack.c.l.b16 %v151
    %v189 = vunpack.c.l.b16 %v152
    %v190 = vunpack.c.l.b16 %v153
    %v191 = vunpack.c.l.b16 %v154
    %v192 = vunpack.c.l.b16 %v155
    %v193 = vunpack.c.l.b16 %v156
    %v194 = vunpack.c.l.b16 %v157
    %v195 = vunpack.c.l.b16 %v158
    %v196 = vpack.c.b16 %v181, %v180
    %v197 = vpack.c.b16 %v183, %v182
    %v198 = vpack.c.b16 %v185, %v184
    %v199 = vpack.c.b16 %v187, %v186
    %v200 = vpack.c.b16 %v189, %v188
    %v201 = vpack.c.b16 %v191, %v190
    %v202 = vpack.c.b16 %v193, %v192
    %v203 = vpack.c.b16 %v195, %v194
    %212 = vmatprep.subr.bf16.mxu0 0
    %213 = vmatpush1.bf16.msra.mxu0 %v196
    %214 = vmatprep.subr.bf16.mxu0 0
    %215 = vmatpush1.bf16.msra.mxu0 %v197
    %216 = vmatprep.subr.bf16.mxu0 0
    %217 = vmatpush1.bf16.msra.mxu0 %v198
    %218 = vmatprep.subr.bf16.mxu0 0
    %219 = vmatpush1.bf16.msra.mxu0 %v199
    %220 = vmatprep.subr.bf16.mxu0 0
    %221 = vmatpush1.bf16.msra.mxu0 %v200
    %222 = vmatprep.subr.bf16.mxu0 0
    %223 = vmatpush1.bf16.msra.mxu0 %v201
    %224 = vmatprep.subr.bf16.mxu0 0
    %225 = vmatpush1.bf16.msra.mxu0 %v202
    %226 = vmatprep.subr.bf16.mxu0 0
    %227 = vmatpush1.bf16.msra.mxu0 %v203
    %228 = vmatprep.subr.bf16.mxu0 0
    %229 = vmatpush1.bf16.msra.mxu0 0
    %230 = vmatprep.subr.bf16.mxu0 0
    %231 = vmatpush1.bf16.msra.mxu0 0
    %232 = vmatprep.subr.bf16.mxu0 0
    %233 = vmatpush1.bf16.msra.mxu0 0
    %234 = vmatprep.subr.bf16.mxu0 0
    %235 = vmatpush1.bf16.msra.mxu0 0
    %236 = vmatprep.subr.bf16.mxu0 0
    %237 = vmatpush1.bf16.msra.mxu0 0
    %238 = vmatprep.subr.bf16.mxu0 0
    %239 = vmatpush1.bf16.msra.mxu0 0
    %240 = vmatprep.subr.bf16.mxu0 0
    %241 = vmatpush1.bf16.msra.mxu0 0
    %242 = vmatprep.subr.bf16.mxu0 0
    %243 = vmatpush1.bf16.msra.mxu0 0
    %244 = vmatprep.mubr.bf16.mxu0 0
    %245 = vmatmul.mubr.bf16.gmra.mrb[0].mxu0 %v142
    %v246 = vpop.f32.mrb[0].mxu0
    %v247 = vadd.f32 %v163, %v246
    %v248 = vpop.f32.mrb[0].mxu0
    %v249 = vpop.f32.mrb[0].mxu0
    %v250 = vpop.f32.mrb[0].mxu0
    %251 = vdwg.mxu0
    %v252 = vmax.f32 %v247, 0.0
    %v253 = vpack.c.bf16 %v252, %v252
    %s254 = scalar_lea.vmem %s2, 64
    %v255 = vld [vmem:[%s254] sm:$0xf]
    %v256 = vld [vmem:[%s254 + $0x4] sm:$0xf]
    %v257 = vld [vmem:[%s254 + $0x8] sm:$0xf]
    %v258 = vld [vmem:[%s254 + $0xc] sm:$0xf]
    %v259 = vld [vmem:[%s254 + $0x10] sm:$0xf]
    %v260 = vld [vmem:[%s254 + $0x14] sm:$0xf]
    %v261 = vld [vmem:[%s254 + $0x18] sm:$0xf]
    %v262 = vld [vmem:[%s254 + $0x1c] sm:$0xf]
    %v263 = vld [vmem:[%s254 + $0x20] sm:$0xf]
    %v264 = vld [vmem:[%s254 + $0x24] sm:$0xf]
    %v265 = vld [vmem:[%s254 + $0x28] sm:$0xf]
    %v266 = vld [vmem:[%s254 + $0x2c] sm:$0xf]
    %v267 = vld [vmem:[%s254 + $0x30] sm:$0xf]
    %v268 = vld [vmem:[%s254 + $0x34] sm:$0xf]
    %v269 = vld [vmem:[%s254 + $0x38] sm:$0xf]
    %v270 = vld [vmem:[%s254 + $0x3c] sm:$0xf]
    %v271 = vld [vmem:[%s3 + $0x2] sm:$0x1]
    %v272 = vlaneseq
    %v273 = vshrl.u32 %v272, 7
    %v274 = vsub.s32 0, %v273
    %v275 = vrot.slane %v271, %v274
    %v292 = vunpack.c.l.b16 %v255
    %v293 = vunpack.c.l.b16 %v256
    %v294 = vunpack.c.l.b16 %v257
    %v295 = vunpack.c.l.b16 %v258
    %v296 = vunpack.c.l.b16 %v259
    %v297 = vunpack.c.l.b16 %v260
    %v298 = vunpack.c.l.b16 %v261
    %v299 = vunpack.c.l.b16 %v262
    %v300 = vunpack.c.l.b16 %v263
    %v301 = vunpack.c.l.b16 %v264
    %v302 = vunpack.c.l.b16 %v265
    %v303 = vunpack.c.l.b16 %v266
    %v304 = vunpack.c.l.b16 %v267
    %v305 = vunpack.c.l.b16 %v268
    %v306 = vunpack.c.l.b16 %v269
    %v307 = vunpack.c.l.b16 %v270
    %v308 = vpack.c.b16 %v293, %v292
    %v309 = vpack.c.b16 %v295, %v294
    %v310 = vpack.c.b16 %v297, %v296
    %v311 = vpack.c.b16 %v299, %v298
    %v312 = vpack.c.b16 %v301, %v300
    %v313 = vpack.c.b16 %v303, %v302
    %v314 = vpack.c.b16 %v305, %v304
    %v315 = vpack.c.b16 %v307, %v306
    %324 = vmatprep.subr.bf16.mxu0 0
    %325 = vmatpush1.bf16.msra.mxu0 %v308
    %326 = vmatprep.subr.bf16.mxu0 0
    %327 = vmatpush1.bf16.msra.mxu0 %v309
    %328 = vmatprep.subr.bf16.mxu0 0
    %329 = vmatpush1.bf16.msra.mxu0 %v310
    %330 = vmatprep.subr.bf16.mxu0 0
    %331 = vmatpush1.bf16.msra.mxu0 %v311
    %332 = vmatprep.subr.bf16.mxu0 0
    %333 = vmatpush1.bf16.msra.mxu0 %v312
    %334 = vmatprep.subr.bf16.mxu0 0
    %335 = vmatpush1.bf16.msra.mxu0 %v313
    %336 = vmatprep.subr.bf16.mxu0 0
    %337 = vmatpush1.bf16.msra.mxu0 %v314
    %338 = vmatprep.subr.bf16.mxu0 0
    %339 = vmatpush1.bf16.msra.mxu0 %v315
    %340 = vmatprep.subr.bf16.mxu0 0
    %341 = vmatpush1.bf16.msra.mxu0 0
    %342 = vmatprep.subr.bf16.mxu0 0
    %343 = vmatpush1.bf16.msra.mxu0 0
    %344 = vmatprep.subr.bf16.mxu0 0
    %345 = vmatpush1.bf16.msra.mxu0 0
    %346 = vmatprep.subr.bf16.mxu0 0
    %347 = vmatpush1.bf16.msra.mxu0 0
    %348 = vmatprep.subr.bf16.mxu0 0
    %349 = vmatpush1.bf16.msra.mxu0 0
    %350 = vmatprep.subr.bf16.mxu0 0
    %351 = vmatpush1.bf16.msra.mxu0 0
    %352 = vmatprep.subr.bf16.mxu0 0
    %353 = vmatpush1.bf16.msra.mxu0 0
    %354 = vmatprep.subr.bf16.mxu0 0
    %355 = vmatpush1.bf16.msra.mxu0 0
    %356 = vmatprep.mubr.bf16.mxu0 0
    %357 = vmatmul.mubr.bf16.gmra.mrb[0].mxu0 %v253
    %v358 = vpop.f32.mrb[0].mxu0
    %v359 = vadd.f32 %v275, %v358
    %v360 = vpop.f32.mrb[0].mxu0
    %v361 = vpop.f32.mrb[0].mxu0
    %v362 = vpop.f32.mrb[0].mxu0
    %363 = vdwg.mxu0
    %v364 = vmax.f32 %v359, 0.0
    %v365 = vpack.c.bf16 %v364, %v364
    %s366 = scalar_lea.vmem %s2, 128
    %v367 = vld [vmem:[%s366] sm:$0xf]
    %v368 = vld [vmem:[%s366 + $0x4] sm:$0xf]
    %v369 = vld [vmem:[%s366 + $0x8] sm:$0xf]
    %v370 = vld [vmem:[%s366 + $0xc] sm:$0xf]
    %v371 = vld [vmem:[%s366 + $0x10] sm:$0xf]
    %v372 = vld [vmem:[%s366 + $0x14] sm:$0xf]
    %v373 = vld [vmem:[%s366 + $0x18] sm:$0xf]
    %v374 = vld [vmem:[%s366 + $0x1c] sm:$0xf]
    %v375 = vld [vmem:[%s366 + $0x20] sm:$0xf]
    %v376 = vld [vmem:[%s366 + $0x24] sm:$0xf]
    %v377 = vld [vmem:[%s366 + $0x28] sm:$0xf]
    %v378 = vld [vmem:[%s366 + $0x2c] sm:$0xf]
    %v379 = vld [vmem:[%s366 + $0x30] sm:$0xf]
    %v380 = vld [vmem:[%s366 + $0x34] sm:$0xf]
    %v381 = vld [vmem:[%s366 + $0x38] sm:$0xf]
    %v382 = vld [vmem:[%s366 + $0x3c] sm:$0xf]
    %v383 = vld [vmem:[%s3 + $0x3] sm:$0x1]
    %v384 = vlaneseq
    %v385 = vshrl.u32 %v384, 7
    %v386 = vsub.s32 0, %v385
    %v387 = vrot.slane %v383, %v386
    %v404 = vunpack.c.l.b16 %v367
    %v405 = vunpack.c.l.b16 %v368
    %v406 = vunpack.c.l.b16 %v369
    %v407 = vunpack.c.l.b16 %v370
    %v408 = vunpack.c.l.b16 %v371
    %v409 = vunpack.c.l.b16 %v372
    %v410 = vunpack.c.l.b16 %v373
    %v411 = vunpack.c.l.b16 %v374
    %v412 = vunpack.c.l.b16 %v375
    %v413 = vunpack.c.l.b16 %v376
    %v414 = vunpack.c.l.b16 %v377
    %v415 = vunpack.c.l.b16 %v378
    %v416 = vunpack.c.l.b16 %v379
    %v417 = vunpack.c.l.b16 %v380
    %v418 = vunpack.c.l.b16 %v381
    %v419 = vunpack.c.l.b16 %v382
    %v420 = vpack.c.b16 %v405, %v404
    %v421 = vpack.c.b16 %v407, %v406
    %v422 = vpack.c.b16 %v409, %v408
    %v423 = vpack.c.b16 %v411, %v410
    %v424 = vpack.c.b16 %v413, %v412
    %v425 = vpack.c.b16 %v415, %v414
    %v426 = vpack.c.b16 %v417, %v416
    %v427 = vpack.c.b16 %v419, %v418
    %436 = vmatprep.subr.bf16.mxu0 0
    %437 = vmatpush1.bf16.msra.mxu0 %v420
    %438 = vmatprep.subr.bf16.mxu0 0
    %439 = vmatpush1.bf16.msra.mxu0 %v421
    %440 = vmatprep.subr.bf16.mxu0 0
    %441 = vmatpush1.bf16.msra.mxu0 %v422
    %442 = vmatprep.subr.bf16.mxu0 0
    %443 = vmatpush1.bf16.msra.mxu0 %v423
    %444 = vmatprep.subr.bf16.mxu0 0
    %445 = vmatpush1.bf16.msra.mxu0 %v424
    %446 = vmatprep.subr.bf16.mxu0 0
    %447 = vmatpush1.bf16.msra.mxu0 %v425
    %448 = vmatprep.subr.bf16.mxu0 0
    %449 = vmatpush1.bf16.msra.mxu0 %v426
    %450 = vmatprep.subr.bf16.mxu0 0
    %451 = vmatpush1.bf16.msra.mxu0 %v427
    %452 = vmatprep.subr.bf16.mxu0 0
    %453 = vmatpush1.bf16.msra.mxu0 0
    %454 = vmatprep.subr.bf16.mxu0 0
    %455 = vmatpush1.bf16.msra.mxu0 0
    %456 = vmatprep.subr.bf16.mxu0 0
    %457 = vmatpush1.bf16.msra.mxu0 0
    %458 = vmatprep.subr.bf16.mxu0 0
    %459 = vmatpush1.bf16.msra.mxu0 0
    %460 = vmatprep.subr.bf16.mxu0 0
    %461 = vmatpush1.bf16.msra.mxu0 0
    %462 = vmatprep.subr.bf16.mxu0 0
    %463 = vmatpush1.bf16.msra.mxu0 0
    %464 = vmatprep.subr.bf16.mxu0 0
    %465 = vmatpush1.bf16.msra.mxu0 0
    %466 = vmatprep.subr.bf16.mxu0 0
    %467 = vmatpush1.bf16.msra.mxu0 0
    %468 = vmatprep.mubr.bf16.mxu0 0
    %469 = vmatmul.mubr.bf16.gmra.mrb[0].mxu0 %v365
    %v470 = vpop.f32.mrb[0].mxu0
    %v471 = vadd.f32 %v387, %v470
    %v472 = vpop.f32.mrb[0].mxu0
    %v473 = vpop.f32.mrb[0].mxu0
    %v474 = vpop.f32.mrb[0].mxu0
    %475 = vdwg.mxu0
    %v476 = vmax.f32 %v471, 0.0
    %v477 = vpack.c.bf16 %v476, %v476
    %s478 = scalar_lea.vmem %s2, 192
    %v479 = vld [vmem:[%s478] sm:$0xf]
    %v480 = vld [vmem:[%s478 + $0x4] sm:$0xf]
    %v481 = vld [vmem:[%s478 + $0x8] sm:$0xf]
    %v482 = vld [vmem:[%s478 + $0xc] sm:$0xf]
    %v483 = vld [vmem:[%s478 + $0x10] sm:$0xf]
    %v484 = vld [vmem:[%s478 + $0x14] sm:$0xf]
    %v485 = vld [vmem:[%s478 + $0x18] sm:$0xf]
    %v486 = vld [vmem:[%s478 + $0x1c] sm:$0xf]
    %v487 = vld [vmem:[%s478 + $0x20] sm:$0xf]
    %v488 = vld [vmem:[%s478 + $0x24] sm:$0xf]
    %v489 = vld [vmem:[%s478 + $0x28] sm:$0xf]
    %v490 = vld [vmem:[%s478 + $0x2c] sm:$0xf]
    %v491 = vld [vmem:[%s478 + $0x30] sm:$0xf]
    %v492 = vld [vmem:[%s478 + $0x34] sm:$0xf]
    %v493 = vld [vmem:[%s478 + $0x38] sm:$0xf]
    %v494 = vld [vmem:[%s478 + $0x3c] sm:$0xf]
    %v495 = vld [vmem:[%s3 + $0x4] sm:$0x1]
    %v496 = vlaneseq
    %v497 = vshrl.u32 %v496, 7
    %v498 = vsub.s32 0, %v497
    %v499 = vrot.slane %v495, %v498
    %v516 = vunpack.c.l.b16 %v479
    %v517 = vunpack.c.l.b16 %v480
    %v518 = vunpack.c.l.b16 %v481
    %v519 = vunpack.c.l.b16 %v482
    %v520 = vunpack.c.l.b16 %v483
    %v521 = vunpack.c.l.b16 %v484
    %v522 = vunpack.c.l.b16 %v485
    %v523 = vunpack.c.l.b16 %v486
    %v524 = vunpack.c.l.b16 %v487
    %v525 = vunpack.c.l.b16 %v488
    %v526 = vunpack.c.l.b16 %v489
    %v527 = vunpack.c.l.b16 %v490
    %v528 = vunpack.c.l.b16 %v491
    %v529 = vunpack.c.l.b16 %v492
    %v530 = vunpack.c.l.b16 %v493
    %v531 = vunpack.c.l.b16 %v494
    %v532 = vpack.c.b16 %v517, %v516
    %v533 = vpack.c.b16 %v519, %v518
    %v534 = vpack.c.b16 %v521, %v520
    %v535 = vpack.c.b16 %v523, %v522
    %v536 = vpack.c.b16 %v525, %v524
    %v537 = vpack.c.b16 %v527, %v526
    %v538 = vpack.c.b16 %v529, %v528
    %v539 = vpack.c.b16 %v531, %v530
    %548 = vmatprep.subr.bf16.mxu0 0
    %549 = vmatpush1.bf16.msra.mxu0 %v532
    %550 = vmatprep.subr.bf16.mxu0 0
    %551 = vmatpush1.bf16.msra.mxu0 %v533
    %552 = vmatprep.subr.bf16.mxu0 0
    %553 = vmatpush1.bf16.msra.mxu0 %v534
    %554 = vmatprep.subr.bf16.mxu0 0
    %555 = vmatpush1.bf16.msra.mxu0 %v535
    %556 = vmatprep.subr.bf16.mxu0 0
    %557 = vmatpush1.bf16.msra.mxu0 %v536
    %558 = vmatprep.subr.bf16.mxu0 0
    %559 = vmatpush1.bf16.msra.mxu0 %v537
    %560 = vmatprep.subr.bf16.mxu0 0
    %561 = vmatpush1.bf16.msra.mxu0 %v538
    %562 = vmatprep.subr.bf16.mxu0 0
    %563 = vmatpush1.bf16.msra.mxu0 %v539
    %564 = vmatprep.subr.bf16.mxu0 0
    %565 = vmatpush1.bf16.msra.mxu0 0
    %566 = vmatprep.subr.bf16.mxu0 0
    %567 = vmatpush1.bf16.msra.mxu0 0
    %568 = vmatprep.subr.bf16.mxu0 0
    %569 = vmatpush1.bf16.msra.mxu0 0
    %570 = vmatprep.subr.bf16.mxu0 0
    %571 = vmatpush1.bf16.msra.mxu0 0
    %572 = vmatprep.subr.bf16.mxu0 0
    %573 = vmatpush1.bf16.msra.mxu0 0
    %574 = vmatprep.subr.bf16.mxu0 0
    %575 = vmatpush1.bf16.msra.mxu0 0
    %576 = vmatprep.subr.bf16.mxu0 0
    %577 = vmatpush1.bf16.msra.mxu0 0
    %578 = vmatprep.subr.bf16.mxu0 0
    %579 = vmatpush1.bf16.msra.mxu0 0
    %580 = vmatprep.mubr.bf16.mxu0 0
    %581 = vmatmul.mubr.bf16.gmra.mrb[0].mxu0 %v477
    %v582 = vpop.f32.mrb[0].mxu0
    %v583 = vadd.f32 %v499, %v582
    %v584 = vpop.f32.mrb[0].mxu0
    %v585 = vpop.f32.mrb[0].mxu0
    %v586 = vpop.f32.mrb[0].mxu0
    %587 = vdwg.mxu0
    %v588 = vmax.f32 %v583, 0.0
    %v589 = vpack.c.bf16 %v588, %v588
    %s590 = scalar_lea.vmem %s2, 256
    %v591 = vld [vmem:[%s590] sm:$0xf]
    %v592 = vld [vmem:[%s590 + $0x4] sm:$0xf]
    %v593 = vld [vmem:[%s590 + $0x8] sm:$0xf]
    %v594 = vld [vmem:[%s590 + $0xc] sm:$0xf]
    %v595 = vld [vmem:[%s590 + $0x10] sm:$0xf]
    %v596 = vld [vmem:[%s590 + $0x14] sm:$0xf]
    %v597 = vld [vmem:[%s590 + $0x18] sm:$0xf]
    %v598 = vld [vmem:[%s590 + $0x1c] sm:$0xf]
    %v599 = vld [vmem:[%s590 + $0x20] sm:$0xf]
    %v600 = vld [vmem:[%s590 + $0x24] sm:$0xf]
    %v601 = vld [vmem:[%s590 + $0x28] sm:$0xf]
    %v602 = vld [vmem:[%s590 + $0x2c] sm:$0xf]
    %v603 = vld [vmem:[%s590 + $0x30] sm:$0xf]
    %v604 = vld [vmem:[%s590 + $0x34] sm:$0xf]
    %v605 = vld [vmem:[%s590 + $0x38] sm:$0xf]
    %v606 = vld [vmem:[%s590 + $0x3c] sm:$0xf]
    %v607 = vld [vmem:[%s3 + $0x5] sm:$0x1]
    %v608 = vlaneseq
    %v609 = vshrl.u32 %v608, 7
    %v610 = vsub.s32 0, %v609
    %v611 = vrot.slane %v607, %v610
    %v628 = vunpack.c.l.b16 %v591
    %v629 = vunpack.c.l.b16 %v592
    %v630 = vunpack.c.l.b16 %v593
    %v631 = vunpack.c.l.b16 %v594
    %v632 = vunpack.c.l.b16 %v595
    %v633 = vunpack.c.l.b16 %v596
    %v634 = vunpack.c.l.b16 %v597
    %v635 = vunpack.c.l.b16 %v598
    %v636 = vunpack.c.l.b16 %v599
    %v637 = vunpack.c.l.b16 %v600
    %v638 = vunpack.c.l.b16 %v601
    %v639 = vunpack.c.l.b16 %v602
    %v640 = vunpack.c.l.b16 %v603
    %v641 = vunpack.c.l.b16 %v604
    %v642 = vunpack.c.l.b16 %v605
    %v643 = vunpack.c.l.b16 %v606
    %v644 = vpack.c.b16 %v629, %v628
    %v645 = vpack.c.b16 %v631, %v630
    %v646 = vpack.c.b16 %v633, %v632
    %v647 = vpack.c.b16 %v635, %v634
    %v648 = vpack.c.b16 %v637, %v636
    %v649 = vpack.c.b16 %v639, %v638
    %v650 = vpack.c.b16 %v641, %v640
    %v651 = vpack.c.b16 %v643, %v642
    %660 = vmatprep.subr.bf16.mxu0 0
    %661 = vmatpush1.bf16.msra.mxu0 %v644
    %662 = vmatprep.subr.bf16.mxu0 0
    %663 = vmatpush1.bf16.msra.mxu0 %v645
    %664 = vmatprep.subr.bf16.mxu0 0
    %665 = vmatpush1.bf16.msra.mxu0 %v646
    %666 = vmatprep.subr.bf16.mxu0 0
    %667 = vmatpush1.bf16.msra.mxu0 %v647
    %668 = vmatprep.subr.bf16.mxu0 0
    %669 = vmatpush1.bf16.msra.mxu0 %v648
    %670 = vmatprep.subr.bf16.mxu0 0
    %671 = vmatpush1.bf16.msra.mxu0 %v649
    %672 = vmatprep.subr.bf16.mxu0 0
    %673 = vmatpush1.bf16.msra.mxu0 %v650
    %674 = vmatprep.subr.bf16.mxu0 0
    %675 = vmatpush1.bf16.msra.mxu0 %v651
    %676 = vmatprep.subr.bf16.mxu0 0
    %677 = vmatpush1.bf16.msra.mxu0 0
    %678 = vmatprep.subr.bf16.mxu0 0
    %679 = vmatpush1.bf16.msra.mxu0 0
    %680 = vmatprep.subr.bf16.mxu0 0
    %681 = vmatpush1.bf16.msra.mxu0 0
    %682 = vmatprep.subr.bf16.mxu0 0
    %683 = vmatpush1.bf16.msra.mxu0 0
    %684 = vmatprep.subr.bf16.mxu0 0
    %685 = vmatpush1.bf16.msra.mxu0 0
    %686 = vmatprep.subr.bf16.mxu0 0
    %687 = vmatpush1.bf16.msra.mxu0 0
    %688 = vmatprep.subr.bf16.mxu0 0
    %689 = vmatpush1.bf16.msra.mxu0 0
    %690 = vmatprep.subr.bf16.mxu0 0
    %691 = vmatpush1.bf16.msra.mxu0 0
    %692 = vmatprep.mubr.bf16.mxu0 0
    %693 = vmatmul.mubr.bf16.gmra.mrb[0].mxu0 %v589
    %v694 = vpop.f32.mrb[0].mxu0
    %v695 = vadd.f32 %v611, %v694
    %v696 = vpop.f32.mrb[0].mxu0
    %v697 = vpop.f32.mrb[0].mxu0
    %v698 = vpop.f32.mrb[0].mxu0
    %699 = vdwg.mxu0
    %v700 = vmax.f32 %v695, 0.0
    %701 = vst [vmem:[%s4] sm:$0xff] %v700
  $region25: #{legal_ai_defender.1} parent=0 // pred_fallthru
    _
  // Predicated region
  $region26: #{legal_ai_defender.1} parent=0 // pred_check
    _
  $region27: #{legal_ai_defender.1} parent=0 // pred_check_branch
    %703 = sbr.rel (0) target = $region29
  $region28: #{legal_ai_defender.1} parent=0 // pred_region
    _
  $region29: #{legal_ai_defender.1} parent=0 // pred_fallthru
    _
  // Predicated region
  $region30: #{legal_ai_defender.1} parent=0 // pred_check
    _
  $region31: #{legal_ai_defender.1} parent=0 // pred_check_branch
    %705 = sbr.rel (0) target = $region33
  $region32: #{legal_ai_defender.1} parent=0 // pred_region
    _
  $region33: #{legal_ai_defender.1} parent=0 // pred_fallthru
    _

</llo_original>
